<compile_context>
chip_gen: v7x
topology: tpu7x:2x2x1
jax: 0.10.0
libtpu: 0.0.40
codegen_flags: <defaults>
</compile_context>

<pallas_src>
import jax
import jax.numpy as jnp
from jax.experimental import pallas as pl
from jax.experimental.pallas import tpu as pltpu


def pool_last_step_bi_kernel(nw_ref, x_ref, w_ref, b_ref, out_ref):
    x = x_ref[...]                                   # (BB, N, D) f32
    BB, N, D = x.shape
    H = D // 2

    nw = nw_ref[...]                                 # (BB, 1) int32
    tgt = jnp.reshape(nw - 1, (BB, 1, 1))            # (BB, 1, 1)

    # Gather x[b, n_wins[b]-1, :] via one-hot mask + reduce over the N axis
    # (VPU compare/select + sublane reduce; no MXU, no transpose).
    n_idx = jax.lax.broadcasted_iota(jnp.int32, (BB, N, D), 1)
    gathered = jnp.sum(jnp.where(n_idx == tgt, x, 0.0), axis=1)   # (BB, D)

    first = x[:, 0, :]                               # (BB, D) -- row 0, full D

    # feat[b, d] = x[b, nw[b]-1, d]  for d <  H  (forward dir, last valid step)
    #            = x[b, 0,       d]  for d >= H  (backward dir, first step)
    lane = jax.lax.broadcasted_iota(jnp.int32, (BB, D), 1)
    feat = jnp.where(lane < H, gathered, first)      # (BB, D)

    # Single batched linear on the MXU: (BB, D) @ (D, O_pad) + (1, O_pad).
    out = jnp.dot(feat, w_ref[...], preferred_element_type=jnp.float32) + b_ref[...]
    out_ref[...] = out.astype(out_ref.dtype)


def pool_last_step_bi(x, n_wins, w, b, *, max_block_b=256):
    """x: (B, N, D) with D even; n_wins: (B,) int; w: (O, D); b: (O,). Returns (B, O)."""
    B, N, D = x.shape
    O = w.shape[0]

    # ---- lane-dense output: pad O up to a multiple of 128 -------------------
    O_pad = ((O + 127) // 128) * 128
    w_t = jnp.zeros((D, O_pad), jnp.float32).at[:, :O].set(w.T.astype(jnp.float32))
    b_p = jnp.zeros((1, O_pad), jnp.float32).at[:, :O].set(
        b.astype(jnp.float32).reshape(1, O))

    # ---- batch blocking ------------------------------------------------------
    # Cap BB so each double-buffered x slab stays ~<= 4 MiB per buffer (fits
    # v5e's 16 MiB default scoped VMEM with room for weights/out; trivially
    # fits v6e/v7x).
    bytes_per_row = N * D * 4
    bb_vmem_cap = max(1, (4 * 1024 * 1024) // bytes_per_row)
    BB = min(B, max_block_b, bb_vmem_cap)
    if BB < B:
        BB = max(8, (BB // 8) * 8)          # (8,128) rule on (BB,1)/(BB,O_pad) blocks
        Bp = ((B + BB - 1) // BB) * BB
    else:
        BB = B
        Bp = B

    xp = x.astype(jnp.float32)
    nwp = n_wins.astype(jnp.int32).reshape(B, 1)
    if Bp != B:
        xp = jnp.pad(xp, ((0, Bp - B), (0, 0), (0, 0)))
        nwp = jnp.pad(nwp, ((0, Bp - B), (0, 0)), constant_values=1)

    grid = (Bp // BB,)

    out = pl.pallas_call(
        pool_last_step_bi_kernel,
        out_shape=jax.ShapeDtypeStruct((Bp, O_pad), jnp.float32),
        grid_spec=pltpu.PrefetchScalarGridSpec(
            num_scalar_prefetch=0,
            grid=grid,
            in_specs=[
                pl.BlockSpec((BB, 1), lambda i: (i, 0)),        # n_wins (VMEM int32)
                pl.BlockSpec((BB, N, D), lambda i: (i, 0, 0)),  # x slab
                pl.BlockSpec((D, O_pad), lambda i: (0, 0)),     # w_t (replicated)
                pl.BlockSpec((1, O_pad), lambda i: (0, 0)),     # bias
            ],
            out_specs=pl.BlockSpec((BB, O_pad), lambda i: (i, 0)),
        ),
        compiler_params=pltpu.CompilerParams(
            dimension_semantics=("parallel",)),
    )(nwp, xp, w_t, b_p)

    return out[:B, :O]


def pool_last_step_bi_ref(x, n_wins, w, b):
    """Pure-JAX reference matching the PyTorch forward exactly."""
    B, N, D = x.shape
    H = D // 2
    xr = x.reshape(B, N, 2, H)
    fwd = xr[jnp.arange(B), n_wins.astype(jnp.int32) - 1, 0, :]   # (B, H)
    bwd = xr[:, 0, 1, :]                                          # (B, H)
    feat = jnp.concatenate([fwd, bwd], axis=1)                    # (B, D)
    return feat @ w.T + b


if __name__ == "__main__":
    B, N, H, O = 2, 8, 16, 4          # batch, windows (= n_wins.max()), hidden/dir, output
    D = 2 * H                         # bi-LSTM feature dim

    key = jax.random.PRNGKey(0)
    kx, kw, kb = jax.random.split(key, 3)

    x = jax.random.normal(kx, (B, N, D), dtype=jnp.float32)
    n_wins = jnp.array([N, 5], dtype=jnp.int32)   # one full-length, one shorter sequence

    # nn.Linear-style init (uniform +/- 1/sqrt(fan_in)), deterministic
    lim = 1.0 / (D ** 0.5)
    w = jax.random.uniform(kw, (O, D), jnp.float32, -lim, lim)
    b = jax.random.uniform(kb, (O,), jnp.float32, -lim, lim)

    out = pool_last_step_bi(x, n_wins, w, b)
    out = jax.block_until_ready(out)

    ref = pool_last_step_bi_ref(x, n_wins, w, b)
    assert out.shape == (B, O), out.shape
    assert jnp.allclose(out, ref, atol=1e-5, rtol=1e-5), (out, ref)

    print("KERNEL_OK")
</pallas_src>

<mosaic_0001>
module attributes {stable_mosaic.version = 11 : i64} {
  func.func @pool_last_step_bi_kernel(%arg0: i32, %arg1: memref<2x1xi32, #tpu.memory_space<vmem>>, %arg2: memref<2x8x32xf32, #tpu.memory_space<vmem>>, %arg3: memref<32x128xf32, #tpu.memory_space<vmem>>, %arg4: memref<1x128xf32, #tpu.memory_space<vmem>>, %arg5: memref<2x128xf32, #tpu.memory_space<vmem>>) attributes {dimension_semantics = [#tpu.dimension_semantics<parallel>], iteration_bounds = array<i64: 1>, scalar_prefetch = 0 : i64, scratch_operands = 0 : i64, tpu.core_type = #tpu.core_type<tc>, window_params = [{transform_indices = @transform_0, window_bounds = array<i64: 2, 1>}, {transform_indices = @transform_1, window_bounds = array<i64: 2, 8, 32>}, {pipeline_mode = #tpu.pipeline_mode<synchronous>, transform_indices = @transform_2, window_bounds = array<i64: 32, 128>}, {pipeline_mode = #tpu.pipeline_mode<synchronous>, transform_indices = @transform_3, window_bounds = array<i64: 1, 128>}, {transform_indices = @transform_4, window_bounds = array<i64: 2, 128>}]} {
    %c0 = arith.constant 0 : index
    %c0_0 = arith.constant 0 : index
    %c0_1 = arith.constant 0 : index
    %0 = vector.load %arg2[%c0, %c0_0, %c0_1] : memref<2x8x32xf32, #tpu.memory_space<vmem>>, vector<2x8x32xf32>
    %c0_2 = arith.constant 0 : index
    %c0_3 = arith.constant 0 : index
    %1 = vector.load %arg1[%c0_2, %c0_3] : memref<2x1xi32, #tpu.memory_space<vmem>>, vector<2x1xi32>
    %c1_i32 = arith.constant 1 : i32
    %2 = vector.broadcast %c1_i32 : i32 to vector<2x1xi32>
    %3 = arith.subi %1, %2 : vector<2x1xi32>
    %4 = vector.shape_cast %3 : vector<2x1xi32> to vector<2x1x1xi32>
    %5 = tpu.iota {dimensions = array<i32: 1>} : vector<2x8x32xi32>
    %6 = vector.broadcast %4 : vector<2x1x1xi32> to vector<2x8x32xi32>
    %7 = arith.cmpi eq, %5, %6 : vector<2x8x32xi32>
    %cst = arith.constant 0.000000e+00 : f32
    %8 = vector.broadcast %cst : f32 to vector<2x8x32xf32>
    %9 = arith.select %7, %0, %8 : vector<2x8x32xi1>, vector<2x8x32xf32>
    %cst_4 = arith.constant dense<0.000000e+00> : vector<2x32xf32>
    %10 = vector.multi_reduction <add>, %9, %cst_4 [1] : vector<2x8x32xf32> to vector<2x32xf32>
    %11 = vector.extract_strided_slice %0 {offsets = [0, 0, 0], sizes = [2, 1, 32], strides = [1, 1, 1]} : vector<2x8x32xf32> to vector<2x1x32xf32>
    %12 = vector.shape_cast %11 : vector<2x1x32xf32> to vector<2x32xf32>
    %13 = tpu.iota {dimensions = array<i32: 1>} : vector<2x32xi32>
    %c16_i32 = arith.constant 16 : i32
    %14 = vector.broadcast %c16_i32 : i32 to vector<2x32xi32>
    %15 = arith.cmpi slt, %13, %14 : vector<2x32xi32>
    %16 = arith.select %15, %10, %12 : vector<2x32xi1>, vector<2x32xf32>
    %c0_5 = arith.constant 0 : index
    %c0_6 = arith.constant 0 : index
    %17 = vector.load %arg3[%c0_5, %c0_6] : memref<32x128xf32, #tpu.memory_space<vmem>>, vector<32x128xf32>
    %cst_7 = arith.constant dense<0.000000e+00> : vector<2x128xf32>
    %18 = tpu.matmul %16, %17, %cst_7 {dimension_numbers = #tpu.dot_dimension_numbers<[1], [0], [0], [1], [0, 0, 1, 1], [], []>} : vector<2x32xf32>, vector<32x128xf32>, vector<2x128xf32> -> vector<2x128xf32>
    %c0_8 = arith.constant 0 : index
    %c0_9 = arith.constant 0 : index
    %19 = vector.load %arg4[%c0_8, %c0_9] : memref<1x128xf32, #tpu.memory_space<vmem>>, vector<1x128xf32>
    %20 = vector.broadcast %19 : vector<1x128xf32> to vector<2x128xf32>
    %21 = arith.addf %18, %20 : vector<2x128xf32>
    %c0_10 = arith.constant 0 : index
    %c0_11 = arith.constant 0 : index
    %22 = vector.load %arg5[%c0_10, %c0_11] : memref<2x128xf32, #tpu.memory_space<vmem>>, vector<2x128xf32>
    tpu.vector_store %arg5[%c0_10, %c0_11], %21 {strides = array<i32>} : memref<2x128xf32, #tpu.memory_space<vmem>>, vector<2x128xf32>,
    return
  }
  func.func @transform_0(%arg0: i32) -> (i32, i32) {
    %c0_i32 = arith.constant 0 : i32
    %c0_i32_0 = arith.constant 0 : i32
    return %arg0, %c0_i32 : i32, i32
  }
  func.func @transform_1(%arg0: i32) -> (i32, i32, i32) {
    %c0_i32 = arith.constant 0 : i32
    %c0_i32_0 = arith.constant 0 : i32
    %c0_i32_1 = arith.constant 0 : i32
    return %arg0, %c0_i32, %c0_i32_0 : i32, i32, i32
  }
  func.func @transform_2(%arg0: i32) -> (i32, i32) {
    %c0_i32 = arith.constant 0 : i32
    %c0_i32_0 = arith.constant 0 : i32
    %c0_i32_1 = arith.constant 0 : i32
    return %c0_i32, %c0_i32_0 : i32, i32
  }
  func.func @transform_3(%arg0: i32) -> (i32, i32) {
    %c0_i32 = arith.constant 0 : i32
    %c0_i32_0 = arith.constant 0 : i32
    %c0_i32_1 = arith.constant 0 : i32
    return %c0_i32, %c0_i32_0 : i32, i32
  }
  func.func @transform_4(%arg0: i32) -> (i32, i32) {
    %c0_i32 = arith.constant 0 : i32
    %c0_i32_0 = arith.constant 0 : i32
    return %arg0, %c0_i32 : i32, i32
  }
}

</mosaic_0001>

<llo_original>
// kernel: tpu_custom_call.1
$region0: #{tpu_custom_call.1}
  #allocation0 [shape = 'u32[]', space=smem, size = 0x4, offset = 0x4, fixed_abs, tag = 'smem constant byte address 0x4 - core index']
  #allocation1 [shape = 'u32[144,128]{1,0:T(1,128)}', space=vmem, size = 0x12000, scoped, tag = 'internal scratch']
  %s0 = inlined_call_operand.vmem [shape: s32[2,1], index: 0, kind: input, shape index: {}]
  %s1 = inlined_call_operand.hbm [shape: f32[2,8,32], index: 1, kind: input, shape index: {}]
  %s2 = inlined_call_operand.hbm [shape: f32[32,128], index: 2, kind: input, shape index: {}]
  %s3 = inlined_call_operand.vmem [shape: f32[1,128], index: 3, kind: input, shape index: {}]
  %s4 = inlined_call_operand.hbm [shape: f32[2,128], index: 4, kind: output, shape index: {}]
  %s5 = sld [smem:[#allocation0]]
  $region34: #{tpu_custom_call.1} parent=0
    _
  %s7 = ssub.s32 1, %s5
  %s8 = scalar_select 0, %s7, %s5
  $region1: #{tpu_custom_call.1} parent=0
    #allocation2 [shape = 'u8[8192]{0}', space=vmem, size = 0x2000, scoped, tag = 'input window, operand 1, single buffered']
    #allocation3 [shape = 's32[1]{0}', space=sflag, size = 0x4, scoped, tag = 'scoped memory for tpu_custom_call.1']
    #allocation4 [shape = 's32[1]{0}', space=sflag, size = 0x4, scoped, tag = 'scoped memory for tpu_custom_call.1']
    #allocation5 [shape = 'u8[16384]{0}', space=vmem, size = 0x4000, scoped, tag = 'input window, operand 2, single buffered']
    #allocation6 [shape = 's32[1]{0}', space=sflag, size = 0x4, scoped, tag = 'scoped memory for tpu_custom_call.1']
    #allocation7 [shape = 'u8[1024]{0}', space=vmem, size = 0x400, scoped, tag = 'output window, operand 0, single buffered']
    %9 = vsyncpa [#allocation3], 0
    %10 = vsyncpa [#allocation6], 0
    %11 = vsyncpa [#allocation4], 0
    // Predicated region
    $region2: #{tpu_custom_call.1} parent=1 // pred_check
      _
    $region3: #{tpu_custom_call.1} parent=1 // pred_check_branch
      %13 = sbr.rel (0) target = $region5
    $region4: #{tpu_custom_call.1} parent=1 // pred_region
      _
    $region5: #{tpu_custom_call.1} parent=1 // pred_fallthru
      _
    // Predicated region
    $region6: #{tpu_custom_call.1} parent=1 // pred_check
      _
    $region7: #{tpu_custom_call.1} parent=1 // pred_check_branch
      %15 = sbr.rel (0) target = $region9
    $region8: #{tpu_custom_call.1} parent=1 // pred_region
      %s17 = ssub.s32 256, 256
      %18 = vsyncadd [#allocation3], %s17
      %s19 = sshll.u32 [#allocation2], 4
      %s20 = int_to_ptr.vmem [resolvable:$true] %s19
      %25 = dma.hbm_to_vmem [thread:$0]  %s1, 256, %s20, [#allocation3], 128, 128, 8
    $region9: #{tpu_custom_call.1} parent=1 // pred_fallthru
      _
    // Predicated region
    $region10: #{tpu_custom_call.1} parent=1 // pred_check
      _
    $region11: #{tpu_custom_call.1} parent=1 // pred_check_branch
      %27 = sbr.rel (0) target = $region13
    $region12: #{tpu_custom_call.1} parent=1 // pred_region
      %s29 = ssub.s32 512, 512
      %30 = vsyncadd [#allocation6], %s29
      %s31 = sshll.u32 [#allocation5], 4
      %s32 = int_to_ptr.vmem [resolvable:$true] %s31
      %37 = dma.hbm_to_vmem [thread:$0]  %s2, 512, %s32, [#allocation6], 128, 128, 8
    $region13: #{tpu_custom_call.1} parent=1 // pred_fallthru
      _
    // Predicated region
    $region14: #{tpu_custom_call.1} parent=1 // pred_check
      _
    $region15: #{tpu_custom_call.1} parent=1 // pred_check_branch
      %39 = sbr.rel (0) target = $region17
    $region16: #{tpu_custom_call.1} parent=1 // pred_region
      _
    $region17: #{tpu_custom_call.1} parent=1 // pred_fallthru
      _
    // Predicated region
    $region18: #{tpu_custom_call.1} parent=1 // pred_check
      _
    $region19: #{tpu_custom_call.1} parent=1 // pred_check_branch
      %41 = sbr.rel (0) target = $region21
    $region20: #{tpu_custom_call.1} parent=1 // pred_region
      %42 = dma.done [#allocation3], 256
    $region21: #{tpu_custom_call.1} parent=1 // pred_fallthru
      _
    // Predicated region
    $region22: #{tpu_custom_call.1} parent=1 // pred_check
      _
    $region23: #{tpu_custom_call.1} parent=1 // pred_check_branch
      %44 = sbr.rel (0) target = $region25
    $region24: #{tpu_custom_call.1} parent=1 // pred_region
      %45 = dma.done [#allocation6], 512
    $region25: #{tpu_custom_call.1} parent=1 // pred_fallthru
      _
    %v46 = vld [vmem:[#allocation2] sm:$0xff]
    %v47 = vld [vmem:[#allocation2 + $0x8] sm:$0xff]
    %v48 = vld [vmem:[%s0] sm:$0x3]
    %v49 = vsub.s32 %v48, 1
    %v51 = vunpack.c.l.s4 1966171168
    %v52 = vunpack.c.0.s8 %v51
    %v53 = vlaneseq
    %v54 = vshrl.u32 %v53, 7
    %v55 = vsub.s32 %v52, %v54
    %v56 = vrot.slane %v49, %v55
    %v57 = vcombine.high %v56, %v56
    %v59 = vunpack.c.l.s4 1966171168
    %v60 = vunpack.c.0.s8 %v59
    %v61 = vlaneseq
    %v62 = vshrl.u32 %v61, 7
    %v63 = vsub.s32 %v60, %v62
    %v64 = vrot.slane %v56, %v63
    %v66 = vunpack.c.l.s4 1966171168
    %v67 = vunpack.c.0.s8 %v66
    %v68 = vlaneseq
    %v69 = vshrl.u32 %v68, 7
    %v70 = vsub.s32 %v67, %v69
    %v71 = vrot.slane %v57, %v70
    %v72 = vlaneseq
    %v73 = vshrl.u32 %v72, 7
    %v74 = vlaneseq
    %v75 = vshrl.u32 %v74, 7
    %v76 = vsub.s32 0, %v75
    %v77 = vrot.slane %v64, %v76
    %v78 = vlaneseq
    %v79 = vshrl.u32 %v78, 7
    %v80 = vsub.s32 0, %v79
    %v81 = vrot.slane %v71, %v80
    %82 = vset.pattern.permute.xlu0 0
    %83 = vperm.xlu0 %82, %v77
    %v84 = vpop.permute.xlu0 %83
    %85 = vset.pattern.permute.xlu0 0
    %86 = vperm.xlu0 %85, %v81
    %v87 = vpop.permute.xlu0 %86
    %vm88 = vcmp.eq.s32.totalorder %v73, %v84
    %vm89 = vcmp.eq.s32.totalorder %v73, %v87
    %v90 = vsel %vm88, %v46, 0.0
    %v91 = vsel %vm89, %v47, 0.0
    %vm92 = vcmask 261120
    %v93 = vsel %vm92, %v90, 0.0
    %v94 = vrot.slane %v93, 4
    %v95 = vadd.f32 %v93, %v94
    %v96 = vrot.slane %v95, 2
    %v97 = vadd.f32 %v95, %v96
    %v98 = vrot.slane %v97, 1
    %v99 = vadd.f32 %v97, %v98
    %v100 = vsel %vm92, %v91, 0.0
    %v101 = vrot.slane %v100, 4
    %v102 = vadd.f32 %v100, %v101
    %v103 = vrot.slane %v102, 2
    %v104 = vadd.f32 %v102, %v103
    %v105 = vrot.slane %v104, 1
    %v106 = vadd.f32 %v104, %v105
    %v107 = vlaneseq
    %v108 = vand.u32 %v107, 127
    %vm109 = vcmp.lt.s32.totalorder %v108, 16
    %vm112 = vcmask 1041409
    %v113 = vsel %vm112, %v106, %v99
    %v117 = vrot.slane %v47, 7
    %v118 = vsel %vm112, %v117, %v46
    %v120 = vsel %vm109, %v113, %v118
    %v121 = vld [vmem:[#allocation5] sm:$0xff]
    %v122 = vld [vmem:[#allocation5 + $0x8] sm:$0xff]
    %v123 = vld [vmem:[#allocation5 + $0x10] sm:$0xff]
    %v124 = vld [vmem:[#allocation5 + $0x18] sm:$0xff]
    %v125 = vld [vmem:[%s3] sm:$0x1]
    %v127 = vlaneseq
    %v128 = vshrl.u32 %v127, 7
    %v129 = vsub.s32 0, %v128
    %v130 = vrot.slane %v125, %v129
    %v133 = vsel %vm92, %v120, 0
    %135 = vmatprep.subr.mxu0 0.0
    %136 = vmatpush1.msra.mxu0 %v121
    %137 = vmatprep.subr.mxu0 0.0
    %138 = vmatpush1.msra.mxu0 %v122
    %139 = vmatprep.subr.mxu0 0.0
    %140 = vmatpush1.msra.mxu0 %v123
    %141 = vmatprep.subr.mxu0 0.0
    %142 = vmatpush1.msra.mxu0 %v124
    %143 = vmatprep.subr.mxu0 0.0
    %144 = vmatpush1.msra.mxu0 0.0
    %145 = vmatprep.subr.mxu0 0.0
    %146 = vmatpush1.msra.mxu0 0.0
    %147 = vmatprep.subr.mxu0 0.0
    %148 = vmatpush1.msra.mxu0 0.0
    %149 = vmatprep.subr.mxu0 0.0
    %150 = vmatpush1.msra.mxu0 0.0
    %151 = vmatprep.subr.mxu0 0.0
    %152 = vmatpush1.msra.mxu0 0.0
    %153 = vmatprep.subr.mxu0 0.0
    %154 = vmatpush1.msra.mxu0 0.0
    %155 = vmatprep.subr.mxu0 0.0
    %156 = vmatpush1.msra.mxu0 0.0
    %157 = vmatprep.subr.mxu0 0.0
    %158 = vmatpush1.msra.mxu0 0.0
    %159 = vmatprep.subr.mxu0 0.0
    %160 = vmatpush1.msra.mxu0 0.0
    %161 = vmatprep.subr.mxu0 0.0
    %162 = vmatpush1.msra.mxu0 0.0
    %163 = vmatprep.subr.mxu0 0.0
    %164 = vmatpush1.msra.mxu0 0.0
    %165 = vmatprep.subr.mxu0 0.0
    %166 = vmatpush1.msra.mxu0 0.0
    %167 = vmatprep.subr.mxu0 0.0
    %168 = vmatpush1.msra.mxu0 0.0
    %169 = vmatprep.subr.mxu0 0.0
    %170 = vmatpush1.msra.mxu0 0.0
    %171 = vmatprep.subr.mxu0 0.0
    %172 = vmatpush1.msra.mxu0 0.0
    %173 = vmatprep.subr.mxu0 0.0
    %174 = vmatpush1.msra.mxu0 0.0
    %175 = vmatprep.subr.mxu0 0.0
    %176 = vmatpush1.msra.mxu0 0.0
    %177 = vmatprep.subr.mxu0 0.0
    %178 = vmatpush1.msra.mxu0 0.0
    %179 = vmatprep.subr.mxu0 0.0
    %180 = vmatpush1.msra.mxu0 0.0
    %181 = vmatprep.subr.mxu0 0.0
    %182 = vmatpush1.msra.mxu0 0.0
    %183 = vmatprep.subr.mxu0 0.0
    %184 = vmatpush1.msra.mxu0 0.0
    %185 = vmatprep.subr.mxu0 0.0
    %186 = vmatpush1.msra.mxu0 0.0
    %187 = vmatprep.subr.mxu0 0.0
    %188 = vmatpush1.msra.mxu0 0.0
    %189 = vmatprep.subr.mxu0 0.0
    %190 = vmatpush1.msra.mxu0 0.0
    %191 = vmatprep.subr.mxu0 0.0
    %192 = vmatpush1.msra.mxu0 0.0
    %193 = vmatprep.subr.mxu0 0.0
    %194 = vmatpush1.msra.mxu0 0.0
    %195 = vmatprep.subr.mxu0 0.0
    %196 = vmatpush1.msra.mxu0 0.0
    %197 = vmatprep.subr.mxu0 0.0
    %198 = vmatpush1.msra.mxu0 0.0
    %199 = vmatprep.mubr.f32.mxu0 0.0
    %200 = vmatmul.mubr.f32.gmra.mrb[0].mxu0 %v133
    %v201 = vpop.f32.mrb[0].mxu0
    %v202 = vadd.f32 %v130, %v201
    %v203 = vpop.f32.mrb[0].mxu0
    %204 = vdwg.mxu0
    %205 = vst [vmem:[#allocation7] sm:$0x3] %v202
    // Predicated region
    $region26: #{tpu_custom_call.1} parent=1 // pred_check
      _
    $region27: #{tpu_custom_call.1} parent=1 // pred_check_branch
      %207 = sbr.rel (0) target = $region29
    $region28: #{tpu_custom_call.1} parent=1 // pred_region
      %s209 = ssub.s32 32, 32
      %210 = vsyncadd [#allocation4], %s209
      %s212 = sshll.u32 [#allocation7], 4
      %s213 = int_to_ptr.vmem [resolvable:$true] %s212
      %215 = dma.vmem_to_hbm [thread:$0]  %s213, 32, %s4, [#allocation4]
    $region29: #{tpu_custom_call.1} parent=1 // pred_fallthru
      _
    // Predicated region
    $region30: #{tpu_custom_call.1} parent=1 // pred_check
      _
    $region31: #{tpu_custom_call.1} parent=1 // pred_check_branch
      %217 = sbr.rel (0) target = $region33
    $region32: #{tpu_custom_call.1} parent=1 // pred_region
      %218 = dma.done [#allocation4], 32
    $region33: #{tpu_custom_call.1} parent=1 // pred_fallthru
      _
    %219 = vsyncpa [#allocation3], 1
    %220 = vsyncpa [#allocation6], 1
    %221 = vsyncpa [#allocation4], 1

</llo_original>
